<compile_context>
chip_gen: v7x
topology: tpu7x:2x2x1
jax: 0.10.0
libtpu: 0.0.40
codegen_flags: <defaults>
</compile_context>

<pallas_src>
import math

import jax
import jax.numpy as jnp
from jax import lax
from jax.experimental import pallas as pl
from jax.experimental.pallas import tpu as pltpu


HIDDEN = 768
NUM_LOGITS = 2          # start / end
TM_MAX = 2048           # rows per grid step (multiple of 128); 2048 x 768 bf16
                        # = 3 MiB/block, 6 MiB double-buffered -> fits every gen


def _qa_kernel(x_ref, w_ref, b_ref, out_ref):
    # x_ref: (tm, 768) compute_dtype, w_ref: (2, 768) compute_dtype,
    # b_ref: (2, 1) f32, out_ref: (2, tm) f32  (lane-dense output)
    acc = lax.dot_general(
        w_ref[...], x_ref[...],
        dimension_numbers=(((1,), (1,)), ((), ())),   # contract over hidden
        preferred_element_type=jnp.float32,
    )                                                  # (2, tm) f32
    out_ref[...] = (acc + b_ref[...]).astype(out_ref.dtype)


def mrc_dense_forward(sequence_out, weight, bias, *, compute_dtype=jnp.bfloat16):
    """sequence_out: (B, S, 768)
       weight:       (2, 768)  (PyTorch nn.Linear layout, no transpose needed)
       bias:         (2,)
       returns (start_logits, end_logits), each (B, S) in sequence_out.dtype."""
    B, S, H = sequence_out.shape
    assert H == HIDDEN
    M = B * S
    x = sequence_out.reshape(M, H)

    # Large bandwidth-friendly tile (multiple of 128); pad M up so no assert
    # can fail for awkward B*S.
    if M <= TM_MAX:
        tm = max(128, ((M + 127) // 128) * 128)
    else:
        tm = TM_MAX
    m_pad = ((M + tm - 1) // tm) * tm
    if m_pad != M:
        x = jnp.pad(x, ((0, m_pad - M), (0, 0)))

    # bf16 feed (MXU-native on v5e/v6e/v7x); accumulation stays f32 in-kernel.
    x = x.astype(compute_dtype)
    w = weight.astype(compute_dtype)
    b = bias.reshape(NUM_LOGITS, 1).astype(jnp.float32)

    grid = (m_pad // tm,)
    itemsize = jnp.dtype(compute_dtype).itemsize
    cost = pl.CostEstimate(
        flops=2 * m_pad * H * NUM_LOGITS,
        transcendentals=0,
        bytes_accessed=m_pad * H * itemsize
        + H * NUM_LOGITS * itemsize
        + m_pad * NUM_LOGITS * 4,
    )

    out = pl.pallas_call(
        _qa_kernel,
        out_shape=jax.ShapeDtypeStruct((NUM_LOGITS, m_pad), jnp.float32),
        grid_spec=pltpu.PrefetchScalarGridSpec(
            num_scalar_prefetch=0,
            grid=grid,
            in_specs=[
                pl.BlockSpec((tm, H), lambda i: (i, 0)),            # x tile
                pl.BlockSpec((NUM_LOGITS, H), lambda i: (0, 0)),    # weight (resident)
                pl.BlockSpec((NUM_LOGITS, 1), lambda i: (0, 0)),    # bias (resident)
            ],
            out_specs=pl.BlockSpec((NUM_LOGITS, tm), lambda i: (0, i)),
        ),
        compiler_params=pltpu.CompilerParams(
            dimension_semantics=("parallel",),
        ),
        cost_estimate=cost,
    )(x, w, b)                                    # (2, m_pad) f32, lane-dense

    out = out[:, :M]
    start_logits = out[0].reshape(B, S).astype(sequence_out.dtype)
    end_logits = out[1].reshape(B, S).astype(sequence_out.dtype)
    return start_logits, end_logits


def init_params(key):
    """Mirror MRC_dense.__init__:
       - weight (2, 768): xavier_normal_  (std = sqrt(2/(fan_in+fan_out)))
       - bias   (2,):     PyTorch Linear default uniform(-1/sqrt(768), 1/sqrt(768))."""
    kw, kb = jax.random.split(key)
    fan_in, fan_out = HIDDEN, NUM_LOGITS
    std = math.sqrt(2.0 / (fan_in + fan_out))
    weight = std * jax.random.normal(kw, (fan_out, fan_in), dtype=jnp.float32)
    bound = 1.0 / math.sqrt(fan_in)
    bias = jax.random.uniform(
        kb, (fan_out,), minval=-bound, maxval=bound, dtype=jnp.float32
    )
    return weight, bias


if __name__ == "__main__":
    key = jax.random.PRNGKey(0)
    k_param, k_x = jax.random.split(key)

    weight, bias = init_params(k_param)

    B, S = 2, 8
    sequence_out = jax.random.normal(k_x, (B, S, HIDDEN), dtype=jnp.float32)

    start_logits, end_logits = mrc_dense_forward(sequence_out, weight, bias)
    jax.block_until_ready((start_logits, end_logits))

    # Reference in plain JAX using the same bf16-cast inputs (f32 accumulation).
    x_ref = sequence_out.astype(jnp.bfloat16).astype(jnp.float32).reshape(-1, HIDDEN)
    w_ref = weight.astype(jnp.bfloat16).astype(jnp.float32)
    ref = (x_ref @ w_ref.T + bias).reshape(B, S, NUM_LOGITS)

    assert start_logits.shape == (B, S) and end_logits.shape == (B, S)
    assert jnp.allclose(start_logits, ref[..., 0], atol=1e-3, rtol=1e-3)
    assert jnp.allclose(end_logits, ref[..., 1], atol=1e-3, rtol=1e-3)

    print("KERNEL_OK")
</pallas_src>

<mosaic_0001>
module attributes {stable_mosaic.version = 11 : i64} {
  func.func @_qa_kernel(%arg0: i32, %arg1: memref<128x768xbf16, #tpu.memory_space<vmem>>, %arg2: memref<2x768xbf16, #tpu.memory_space<vmem>>, %arg3: memref<2x1xf32, #tpu.memory_space<vmem>>, %arg4: memref<2x128xf32, #tpu.memory_space<vmem>>) attributes {dimension_semantics = [#tpu.dimension_semantics<parallel>], iteration_bounds = array<i64: 1>, scalar_prefetch = 0 : i64, scratch_operands = 0 : i64, tpu.core_type = #tpu.core_type<tc>, window_params = [{transform_indices = @transform_0, window_bounds = array<i64: 128, 768>}, {pipeline_mode = #tpu.pipeline_mode<synchronous>, transform_indices = @transform_1, window_bounds = array<i64: 2, 768>}, {pipeline_mode = #tpu.pipeline_mode<synchronous>, transform_indices = @transform_2, window_bounds = array<i64: 2, 1>}, {transform_indices = @transform_3, window_bounds = array<i64: 2, 128>}]} {
    %c0 = arith.constant 0 : index
    %c0_0 = arith.constant 0 : index
    %0 = vector.load %arg2[%c0, %c0_0] : memref<2x768xbf16, #tpu.memory_space<vmem>>, vector<2x768xbf16>
    %c0_1 = arith.constant 0 : index
    %c0_2 = arith.constant 0 : index
    %1 = vector.load %arg1[%c0_1, %c0_2] : memref<128x768xbf16, #tpu.memory_space<vmem>>, vector<128x768xbf16>
    %cst = arith.constant dense<0.000000e+00> : vector<2x128xf32>
    %2 = tpu.matmul %0, %1, %cst {dimension_numbers = #tpu.dot_dimension_numbers<[1], [1], [0], [0], [0, 0, 1, 0], [], []>} : vector<2x768xbf16>, vector<128x768xbf16>, vector<2x128xf32> -> vector<2x128xf32>
    %c0_3 = arith.constant 0 : index
    %c0_4 = arith.constant 0 : index
    %3 = vector.load %arg3[%c0_3, %c0_4] : memref<2x1xf32, #tpu.memory_space<vmem>>, vector<2x1xf32>
    %4 = vector.broadcast %3 : vector<2x1xf32> to vector<2x128xf32>
    %5 = arith.addf %2, %4 : vector<2x128xf32>
    %c0_5 = arith.constant 0 : index
    %c0_6 = arith.constant 0 : index
    %6 = vector.load %arg4[%c0_5, %c0_6] : memref<2x128xf32, #tpu.memory_space<vmem>>, vector<2x128xf32>
    tpu.vector_store %arg4[%c0_5, %c0_6], %5 {strides = array<i32>} : memref<2x128xf32, #tpu.memory_space<vmem>>, vector<2x128xf32>,
    return
  }
  func.func @transform_0(%arg0: i32) -> (i32, i32) {
    %c0_i32 = arith.constant 0 : i32
    %c0_i32_0 = arith.constant 0 : i32
    return %arg0, %c0_i32 : i32, i32
  }
  func.func @transform_1(%arg0: i32) -> (i32, i32) {
    %c0_i32 = arith.constant 0 : i32
    %c0_i32_0 = arith.constant 0 : i32
    %c0_i32_1 = arith.constant 0 : i32
    return %c0_i32, %c0_i32_0 : i32, i32
  }
  func.func @transform_2(%arg0: i32) -> (i32, i32) {
    %c0_i32 = arith.constant 0 : i32
    %c0_i32_0 = arith.constant 0 : i32
    %c0_i32_1 = arith.constant 0 : i32
    return %c0_i32, %c0_i32_0 : i32, i32
  }
  func.func @transform_3(%arg0: i32) -> (i32, i32) {
    %c0_i32 = arith.constant 0 : i32
    %c0_i32_0 = arith.constant 0 : i32
    return %c0_i32, %arg0 : i32, i32
  }
}

</mosaic_0001>

<llo_original>
// kernel: tpu_custom_call.1
$region0: #{tpu_custom_call.1}
  #allocation0 [shape = 'u32[]', space=smem, size = 0x4, offset = 0x4, fixed_abs, tag = 'smem constant byte address 0x4 - core index']
  #allocation1 [shape = 'u32[144,128]{1,0:T(1,128)}', space=vmem, size = 0x12000, scoped, tag = 'internal scratch']
  %s0 = inlined_call_operand.hbm [shape: bf16[128,768], index: 0, kind: input, shape index: {}]
  %s1 = inlined_call_operand.vmem [shape: bf16[2,768], index: 1, kind: input, shape index: {}]
  %s2 = inlined_call_operand.vmem [shape: f32[2,1], index: 2, kind: input, shape index: {}]
  %s3 = inlined_call_operand.hbm [shape: f32[2,128], index: 3, kind: output, shape index: {}]
  %s4 = sld [smem:[#allocation0]]
  $region26: #{tpu_custom_call.1} parent=0
    _
  %s6 = ssub.s32 1, %s4
  %s7 = scalar_select 0, %s6, %s4
  $region1: #{tpu_custom_call.1} parent=0
    #allocation2 [shape = 'u8[196608]{0}', space=vmem, size = 0x30000, scoped, tag = 'input window, operand 0, single buffered']
    #allocation3 [shape = 's32[1]{0}', space=sflag, size = 0x4, scoped, tag = 'scoped memory for tpu_custom_call.1']
    #allocation4 [shape = 's32[1]{0}', space=sflag, size = 0x4, scoped, tag = 'scoped memory for tpu_custom_call.1']
    #allocation5 [shape = 'u8[1024]{0}', space=vmem, size = 0x400, scoped, tag = 'output window, operand 0, single buffered']
    %8 = vsyncpa [#allocation3], 0
    %9 = vsyncpa [#allocation4], 0
    // Predicated region
    $region2: #{tpu_custom_call.1} parent=1 // pred_check
      _
    $region3: #{tpu_custom_call.1} parent=1 // pred_check_branch
      %11 = sbr.rel (0) target = $region5
    $region4: #{tpu_custom_call.1} parent=1 // pred_region
      %s13 = ssub.s32 6144, 6144
      %14 = vsyncadd [#allocation3], %s13
      %s15 = sshll.u32 [#allocation2], 4
      %s16 = int_to_ptr.vmem [resolvable:$true] %s15
      %21 = dma.hbm_to_vmem [thread:$0]  %s0, 6144, %s16, [#allocation3], 384, 384, 24
    $region5: #{tpu_custom_call.1} parent=1 // pred_fallthru
      _
    // Predicated region
    $region6: #{tpu_custom_call.1} parent=1 // pred_check
      _
    $region7: #{tpu_custom_call.1} parent=1 // pred_check_branch
      %23 = sbr.rel (0) target = $region9
    $region8: #{tpu_custom_call.1} parent=1 // pred_region
      _
    $region9: #{tpu_custom_call.1} parent=1 // pred_fallthru
      _
    // Predicated region
    $region10: #{tpu_custom_call.1} parent=1 // pred_check
      _
    $region11: #{tpu_custom_call.1} parent=1 // pred_check_branch
      %25 = sbr.rel (0) target = $region13
    $region12: #{tpu_custom_call.1} parent=1 // pred_region
      _
    $region13: #{tpu_custom_call.1} parent=1 // pred_fallthru
      _
    // Predicated region
    $region14: #{tpu_custom_call.1} parent=1 // pred_check
      _
    $region15: #{tpu_custom_call.1} parent=1 // pred_check_branch
      %27 = sbr.rel (0) target = $region17
    $region16: #{tpu_custom_call.1} parent=1 // pred_region
      %28 = dma.done [#allocation3], 6144
    $region17: #{tpu_custom_call.1} parent=1 // pred_fallthru
      _
    %v30 = vld [vmem:[%s1] sm:$0x3f]
    %v31 = vld [vmem:[#allocation2] sm:$0xff]
    %v32 = vld [vmem:[#allocation2 + $0x8] sm:$0xff]
    %v33 = vld [vmem:[#allocation2 + $0x10] sm:$0xff]
    %v34 = vld [vmem:[#allocation2 + $0x18] sm:$0xff]
    %v35 = vld [vmem:[#allocation2 + $0x20] sm:$0xff]
    %v36 = vld [vmem:[#allocation2 + $0x28] sm:$0xff]
    %v37 = vld [vmem:[#allocation2 + $0x30] sm:$0xff]
    %v38 = vld [vmem:[#allocation2 + $0x38] sm:$0xff]
    %v39 = vld [vmem:[#allocation2 + $0x40] sm:$0xff]
    %v40 = vld [vmem:[#allocation2 + $0x48] sm:$0xff]
    %v41 = vld [vmem:[#allocation2 + $0x50] sm:$0xff]
    %v42 = vld [vmem:[#allocation2 + $0x58] sm:$0xff]
    %v43 = vld [vmem:[#allocation2 + $0x60] sm:$0xff]
    %v44 = vld [vmem:[#allocation2 + $0x68] sm:$0xff]
    %v45 = vld [vmem:[#allocation2 + $0x70] sm:$0xff]
    %v46 = vld [vmem:[#allocation2 + $0x78] sm:$0xff]
    %v47 = vld [vmem:[#allocation2 + $0x80] sm:$0xff]
    %v48 = vld [vmem:[#allocation2 + $0x88] sm:$0xff]
    %v49 = vld [vmem:[#allocation2 + $0x90] sm:$0xff]
    %v50 = vld [vmem:[#allocation2 + $0x98] sm:$0xff]
    %v51 = vld [vmem:[#allocation2 + $0xa0] sm:$0xff]
    %v52 = vld [vmem:[#allocation2 + $0xa8] sm:$0xff]
    %v53 = vld [vmem:[#allocation2 + $0xb0] sm:$0xff]
    %v54 = vld [vmem:[#allocation2 + $0xb8] sm:$0xff]
    %v55 = vld [vmem:[#allocation2 + $0xc0] sm:$0xff]
    %v56 = vld [vmem:[#allocation2 + $0xc8] sm:$0xff]
    %v57 = vld [vmem:[#allocation2 + $0xd0] sm:$0xff]
    %v58 = vld [vmem:[#allocation2 + $0xd8] sm:$0xff]
    %v59 = vld [vmem:[#allocation2 + $0xe0] sm:$0xff]
    %v60 = vld [vmem:[#allocation2 + $0xe8] sm:$0xff]
    %v61 = vld [vmem:[#allocation2 + $0xf0] sm:$0xff]
    %v62 = vld [vmem:[#allocation2 + $0xf8] sm:$0xff]
    %v63 = vld [vmem:[#allocation2 + $0x100] sm:$0xff]
    %v64 = vld [vmem:[#allocation2 + $0x108] sm:$0xff]
    %v65 = vld [vmem:[#allocation2 + $0x110] sm:$0xff]
    %v66 = vld [vmem:[#allocation2 + $0x118] sm:$0xff]
    %v67 = vld [vmem:[#allocation2 + $0x120] sm:$0xff]
    %v68 = vld [vmem:[#allocation2 + $0x128] sm:$0xff]
    %v69 = vld [vmem:[#allocation2 + $0x130] sm:$0xff]
    %v70 = vld [vmem:[#allocation2 + $0x138] sm:$0xff]
    %v71 = vld [vmem:[#allocation2 + $0x140] sm:$0xff]
    %v72 = vld [vmem:[#allocation2 + $0x148] sm:$0xff]
    %v73 = vld [vmem:[#allocation2 + $0x150] sm:$0xff]
    %v74 = vld [vmem:[#allocation2 + $0x158] sm:$0xff]
    %v75 = vld [vmem:[#allocation2 + $0x160] sm:$0xff]
    %v76 = vld [vmem:[#allocation2 + $0x168] sm:$0xff]
    %v77 = vld [vmem:[#allocation2 + $0x170] sm:$0xff]
    %v78 = vld [vmem:[#allocation2 + $0x178] sm:$0xff]
    %v79 = vld [vmem:[%s2] sm:$0x3]
    %81 = vset.pattern.permute.xlu0 0
    %82 = vperm.xlu0 %81, %v79
    %v83 = vpop.permute.xlu0 %82
    %v86 = vcombine.high %v30, %v30
    %v88 = vunpack.c.l.s4 1966171168
    %v89 = vunpack.c.0.s8 %v88
    %v90 = vlaneseq
    %v91 = vshrl.u32 %v90, 7
    %v92 = vsub.s32 %v89, %v91
    %v93 = vrot.slane %v30, %v92
    %v95 = vunpack.c.l.s4 1966171168
    %v96 = vunpack.c.0.s8 %v95
    %v97 = vlaneseq
    %v98 = vshrl.u32 %v97, 7
    %v99 = vsub.s32 %v96, %v98
    %v100 = vrot.slane %v86, %v99
    %v101 = vcombine.high %v93, %v93
    %v102 = vcombine.high %v100, %v100
    %v104 = vunpack.c.l.s4 1966171168
    %v105 = vunpack.c.0.s8 %v104
    %v106 = vlaneseq
    %v107 = vshrl.u32 %v106, 7
    %v108 = vsub.s32 %v105, %v107
    %v109 = vrot.slane %v93, %v108
    %v111 = vunpack.c.l.s4 1966171168
    %v112 = vunpack.c.0.s8 %v111
    %v113 = vlaneseq
    %v114 = vshrl.u32 %v113, 7
    %v115 = vsub.s32 %v112, %v114
    %v116 = vrot.slane %v100, %v115
    %v118 = vunpack.c.l.s4 1966171168
    %v119 = vunpack.c.0.s8 %v118
    %v120 = vlaneseq
    %v121 = vshrl.u32 %v120, 7
    %v122 = vsub.s32 %v119, %v121
    %v123 = vrot.slane %v101, %v122
    %v125 = vunpack.c.l.s4 1966171168
    %v126 = vunpack.c.0.s8 %v125
    %v127 = vlaneseq
    %v128 = vshrl.u32 %v127, 7
    %v129 = vsub.s32 %v126, %v128
    %v130 = vrot.slane %v102, %v129
    %v131 = vcombine.high %v109, %v109
    %v132 = vcombine.high %v123, %v123
    %v187 = vunpack.c.l.b16 %v31
    %v188 = vunpack.c.h.b16 %v31
    %v189 = vunpack.c.l.b16 %v32
    %v190 = vunpack.c.h.b16 %v32
    %v191 = vunpack.c.l.b16 %v33
    %v192 = vunpack.c.h.b16 %v33
    %v193 = vunpack.c.l.b16 %v34
    %v194 = vunpack.c.h.b16 %v34
    %v195 = vunpack.c.l.b16 %v35
    %v196 = vunpack.c.h.b16 %v35
    %v197 = vunpack.c.l.b16 %v36
    %v198 = vunpack.c.h.b16 %v36
    %v199 = vunpack.c.l.b16 %v37
    %v200 = vunpack.c.h.b16 %v37
    %v201 = vunpack.c.l.b16 %v38
    %v202 = vunpack.c.h.b16 %v38
    %v203 = vunpack.c.l.b16 %v39
    %v204 = vunpack.c.h.b16 %v39
    %v205 = vunpack.c.l.b16 %v40
    %v206 = vunpack.c.h.b16 %v40
    %v207 = vunpack.c.l.b16 %v41
    %v208 = vunpack.c.h.b16 %v41
    %v209 = vunpack.c.l.b16 %v42
    %v210 = vunpack.c.h.b16 %v42
    %v211 = vunpack.c.l.b16 %v43
    %v212 = vunpack.c.h.b16 %v43
    %v213 = vunpack.c.l.b16 %v44
    %v214 = vunpack.c.h.b16 %v44
    %v215 = vunpack.c.l.b16 %v45
    %v216 = vunpack.c.h.b16 %v45
    %v217 = vunpack.c.l.b16 %v46
    %v218 = vunpack.c.h.b16 %v46
    %v219 = vunpack.c.l.b16 %v47
    %v220 = vunpack.c.h.b16 %v47
    %v221 = vunpack.c.l.b16 %v48
    %v222 = vunpack.c.h.b16 %v48
    %v223 = vunpack.c.l.b16 %v49
    %v224 = vunpack.c.h.b16 %v49
    %v225 = vunpack.c.l.b16 %v50
    %v226 = vunpack.c.h.b16 %v50
    %v227 = vunpack.c.l.b16 %v51
    %v228 = vunpack.c.h.b16 %v51
    %v229 = vunpack.c.l.b16 %v52
    %v230 = vunpack.c.h.b16 %v52
    %v231 = vunpack.c.l.b16 %v53
    %v232 = vunpack.c.h.b16 %v53
    %v233 = vunpack.c.l.b16 %v54
    %v234 = vunpack.c.h.b16 %v54
    %v235 = vunpack.c.l.b16 %v55
    %v236 = vunpack.c.h.b16 %v55
    %v237 = vunpack.c.l.b16 %v56
    %v238 = vunpack.c.h.b16 %v56
    %v239 = vunpack.c.l.b16 %v57
    %v240 = vunpack.c.h.b16 %v57
    %v241 = vunpack.c.l.b16 %v58
    %v242 = vunpack.c.h.b16 %v58
    %v243 = vunpack.c.l.b16 %v59
    %v244 = vunpack.c.h.b16 %v59
    %v245 = vunpack.c.l.b16 %v60
    %v246 = vunpack.c.h.b16 %v60
    %v247 = vunpack.c.l.b16 %v61
    %v248 = vunpack.c.h.b16 %v61
    %v249 = vunpack.c.l.b16 %v62
    %v250 = vunpack.c.h.b16 %v62
    %v251 = vunpack.c.l.b16 %v63
    %v252 = vunpack.c.h.b16 %v63
    %v253 = vunpack.c.l.b16 %v64
    %v254 = vunpack.c.h.b16 %v64
    %v255 = vunpack.c.l.b16 %v65
    %v256 = vunpack.c.h.b16 %v65
    %v257 = vunpack.c.l.b16 %v66
    %v258 = vunpack.c.h.b16 %v66
    %v259 = vunpack.c.l.b16 %v67
    %v260 = vunpack.c.h.b16 %v67
    %v261 = vunpack.c.l.b16 %v68
    %v262 = vunpack.c.h.b16 %v68
    %v263 = vunpack.c.l.b16 %v69
    %v264 = vunpack.c.h.b16 %v69
    %v265 = vunpack.c.l.b16 %v70
    %v266 = vunpack.c.h.b16 %v70
    %v267 = vunpack.c.l.b16 %v71
    %v268 = vunpack.c.h.b16 %v71
    %v269 = vunpack.c.l.b16 %v72
    %v270 = vunpack.c.h.b16 %v72
    %v271 = vunpack.c.l.b16 %v73
    %v272 = vunpack.c.h.b16 %v73
    %v273 = vunpack.c.l.b16 %v74
    %v274 = vunpack.c.h.b16 %v74
    %v275 = vunpack.c.l.b16 %v75
    %v276 = vunpack.c.h.b16 %v75
    %v277 = vunpack.c.l.b16 %v76
    %v278 = vunpack.c.h.b16 %v76
    %v279 = vunpack.c.l.b16 %v77
    %v280 = vunpack.c.h.b16 %v77
    %v281 = vunpack.c.l.b16 %v78
    %v282 = vunpack.c.h.b16 %v78
    %v283 = vpack.c.b16 %v193, %v187
    %v284 = vpack.c.b16 %v194, %v188
    %v285 = vpack.c.b16 %v195, %v189
    %v286 = vpack.c.b16 %v196, %v190
    %v287 = vpack.c.b16 %v197, %v191
    %v288 = vpack.c.b16 %v198, %v192
    %v289 = vpack.c.b16 %v205, %v199
    %v290 = vpack.c.b16 %v206, %v200
    %v291 = vpack.c.b16 %v207, %v201
    %v292 = vpack.c.b16 %v208, %v202
    %v293 = vpack.c.b16 %v209, %v203
    %v294 = vpack.c.b16 %v210, %v204
    %v295 = vpack.c.b16 %v217, %v211
    %v296 = vpack.c.b16 %v218, %v212
    %v297 = vpack.c.b16 %v219, %v213
    %v298 = vpack.c.b16 %v220, %v214
    %v299 = vpack.c.b16 %v221, %v215
    %v300 = vpack.c.b16 %v222, %v216
    %v301 = vpack.c.b16 %v229, %v223
    %v302 = vpack.c.b16 %v230, %v224
    %v303 = vpack.c.b16 %v231, %v225
    %v304 = vpack.c.b16 %v232, %v226
    %v305 = vpack.c.b16 %v233, %v227
    %v306 = vpack.c.b16 %v234, %v228
    %v307 = vpack.c.b16 %v241, %v235
    %v308 = vpack.c.b16 %v242, %v236
    %v309 = vpack.c.b16 %v243, %v237
    %v310 = vpack.c.b16 %v244, %v238
    %v311 = vpack.c.b16 %v245, %v239
    %v312 = vpack.c.b16 %v246, %v240
    %v313 = vpack.c.b16 %v253, %v247
    %v314 = vpack.c.b16 %v254, %v248
    %v315 = vpack.c.b16 %v255, %v249
    %v316 = vpack.c.b16 %v256, %v250
    %v317 = vpack.c.b16 %v257, %v251
    %v318 = vpack.c.b16 %v258, %v252
    %v319 = vpack.c.b16 %v265, %v259
    %v320 = vpack.c.b16 %v266, %v260
    %v321 = vpack.c.b16 %v267, %v261
    %v322 = vpack.c.b16 %v268, %v262
    %v323 = vpack.c.b16 %v269, %v263
    %v324 = vpack.c.b16 %v270, %v264
    %v325 = vpack.c.b16 %v277, %v271
    %v326 = vpack.c.b16 %v278, %v272
    %v327 = vpack.c.b16 %v279, %v273
    %v328 = vpack.c.b16 %v280, %v274
    %v329 = vpack.c.b16 %v281, %v275
    %v330 = vpack.c.b16 %v282, %v276
    %379 = vmatprep.subr.bf16.mxu0 %v284
    %380 = vmatpush1.bf16.xpose.msra.mxu0 %v283
    %381 = vmatprep.subr.bf16.mxu0 %v290
    %382 = vmatpush1.bf16.xpose.msra.mxu0 %v289
    %383 = vmatprep.subr.bf16.mxu0 %v296
    %384 = vmatpush1.bf16.xpose.msra.mxu0 %v295
    %385 = vmatprep.subr.bf16.mxu0 %v302
    %386 = vmatpush1.bf16.xpose.msra.mxu0 %v301
    %387 = vmatprep.subr.bf16.mxu0 %v308
    %388 = vmatpush1.bf16.xpose.msra.mxu0 %v307
    %389 = vmatprep.subr.bf16.mxu0 %v314
    %390 = vmatpush1.bf16.xpose.msra.mxu0 %v313
    %391 = vmatprep.subr.bf16.mxu0 %v320
    %392 = vmatpush1.bf16.xpose.msra.mxu0 %v319
    %393 = vmatprep.subr.bf16.mxu0 %v326
    %394 = vmatpush1.bf16.xpose.msra.mxu0 %v325
    %395 = vmatprep.subr.bf16.mxu0 0
    %396 = vmatpush1.bf16.xpose.msra.mxu0 0
    %397 = vmatprep.subr.bf16.mxu0 0
    %398 = vmatpush1.bf16.xpose.msra.mxu0 0
    %399 = vmatprep.subr.bf16.mxu0 0
    %400 = vmatpush1.bf16.xpose.msra.mxu0 0
    %401 = vmatprep.subr.bf16.mxu0 0
    %402 = vmatpush1.bf16.xpose.msra.mxu0 0
    %403 = vmatprep.subr.bf16.mxu0 0
    %404 = vmatpush1.bf16.xpose.msra.mxu0 0
    %405 = vmatprep.subr.bf16.mxu0 0
    %406 = vmatpush1.bf16.xpose.msra.mxu0 0
    %407 = vmatprep.subr.bf16.mxu0 0
    %408 = vmatpush1.bf16.xpose.msra.mxu0 0
    %409 = vmatprep.subr.bf16.mxu0 0
    %410 = vmatpush1.bf16.xpose.msra.mxu0 0
    %411 = vmatprep.mubr.bf16.mxu0 %v123
    %412 = vmatmul.mubr.bf16.gmra.mrb[0].mxu0 %v109
    %v413 = vpop.f32.mrb[0].mxu0
    %v414 = vadd.f32 %v83, %v413
    %v415 = vpop.f32.mrb[0].mxu0
    %v416 = vpop.f32.mrb[0].mxu0
    %v417 = vpop.f32.mrb[0].mxu0
    %418 = vdwg.mxu0
    %419 = vmatprep.subr.bf16.mxu0 %v286
    %420 = vmatpush1.bf16.xpose.msra.mxu0 %v285
    %421 = vmatprep.subr.bf16.mxu0 %v292
    %422 = vmatpush1.bf16.xpose.msra.mxu0 %v291
    %423 = vmatprep.subr.bf16.mxu0 %v298
    %424 = vmatpush1.bf16.xpose.msra.mxu0 %v297
    %425 = vmatprep.subr.bf16.mxu0 %v304
    %426 = vmatpush1.bf16.xpose.msra.mxu0 %v303
    %427 = vmatprep.subr.bf16.mxu0 %v310
    %428 = vmatpush1.bf16.xpose.msra.mxu0 %v309
    %429 = vmatprep.subr.bf16.mxu0 %v316
    %430 = vmatpush1.bf16.xpose.msra.mxu0 %v315
    %431 = vmatprep.subr.bf16.mxu0 %v322
    %432 = vmatpush1.bf16.xpose.msra.mxu0 %v321
    %433 = vmatprep.subr.bf16.mxu0 %v328
    %434 = vmatpush1.bf16.xpose.msra.mxu0 %v327
    %435 = vmatprep.subr.bf16.mxu0 0
    %436 = vmatpush1.bf16.xpose.msra.mxu0 0
    %437 = vmatprep.subr.bf16.mxu0 0
    %438 = vmatpush1.bf16.xpose.msra.mxu0 0
    %439 = vmatprep.subr.bf16.mxu0 0
    %440 = vmatpush1.bf16.xpose.msra.mxu0 0
    %441 = vmatprep.subr.bf16.mxu0 0
    %442 = vmatpush1.bf16.xpose.msra.mxu0 0
    %443 = vmatprep.subr.bf16.mxu0 0
    %444 = vmatpush1.bf16.xpose.msra.mxu0 0
    %445 = vmatprep.subr.bf16.mxu0 0
    %446 = vmatpush1.bf16.xpose.msra.mxu0 0
    %447 = vmatprep.subr.bf16.mxu0 0
    %448 = vmatpush1.bf16.xpose.msra.mxu0 0
    %449 = vmatprep.subr.bf16.mxu0 0
    %450 = vmatpush1.bf16.xpose.msra.mxu0 0
    %451 = vmatprep.mubr.bf16.mxu0 %v132
    %452 = vmatmul.mubr.bf16.gmra.mrb[0].mxu0 %v131
    %v453 = vpop.f32.mrb[0].mxu0
    %v454 = vadd.f32 %v414, %v453
    %v455 = vpop.f32.mrb[0].mxu0
    %v456 = vpop.f32.mrb[0].mxu0
    %v457 = vpop.f32.mrb[0].mxu0
    %458 = vdwg.mxu0
    %459 = vmatprep.subr.bf16.mxu0 %v288
    %460 = vmatpush1.bf16.xpose.msra.mxu0 %v287
    %461 = vmatprep.subr.bf16.mxu0 %v294
    %462 = vmatpush1.bf16.xpose.msra.mxu0 %v293
    %463 = vmatprep.subr.bf16.mxu0 %v300
    %464 = vmatpush1.bf16.xpose.msra.mxu0 %v299
    %465 = vmatprep.subr.bf16.mxu0 %v306
    %466 = vmatpush1.bf16.xpose.msra.mxu0 %v305
    %467 = vmatprep.subr.bf16.mxu0 %v312
    %468 = vmatpush1.bf16.xpose.msra.mxu0 %v311
    %469 = vmatprep.subr.bf16.mxu0 %v318
    %470 = vmatpush1.bf16.xpose.msra.mxu0 %v317
    %471 = vmatprep.subr.bf16.mxu0 %v324
    %472 = vmatpush1.bf16.xpose.msra.mxu0 %v323
    %473 = vmatprep.subr.bf16.mxu0 %v330
    %474 = vmatpush1.bf16.xpose.msra.mxu0 %v329
    %475 = vmatprep.subr.bf16.mxu0 0
    %476 = vmatpush1.bf16.xpose.msra.mxu0 0
    %477 = vmatprep.subr.bf16.mxu0 0
    %478 = vmatpush1.bf16.xpose.msra.mxu0 0
    %479 = vmatprep.subr.bf16.mxu0 0
    %480 = vmatpush1.bf16.xpose.msra.mxu0 0
    %481 = vmatprep.subr.bf16.mxu0 0
    %482 = vmatpush1.bf16.xpose.msra.mxu0 0
    %483 = vmatprep.subr.bf16.mxu0 0
    %484 = vmatpush1.bf16.xpose.msra.mxu0 0
    %485 = vmatprep.subr.bf16.mxu0 0
    %486 = vmatpush1.bf16.xpose.msra.mxu0 0
    %487 = vmatprep.subr.bf16.mxu0 0
    %488 = vmatpush1.bf16.xpose.msra.mxu0 0
    %489 = vmatprep.subr.bf16.mxu0 0
    %490 = vmatpush1.bf16.xpose.msra.mxu0 0
    %491 = vmatprep.mubr.bf16.mxu0 %v130
    %492 = vmatmul.mubr.bf16.gmra.mrb[0].mxu0 %v116
    %v493 = vpop.f32.mrb[0].mxu0
    %v494 = vadd.f32 %v454, %v493
    %v495 = vpop.f32.mrb[0].mxu0
    %v496 = vpop.f32.mrb[0].mxu0
    %v497 = vpop.f32.mrb[0].mxu0
    %498 = vdwg.mxu0
    %499 = vst [vmem:[#allocation5] sm:$0x3] %v494
    // Predicated region
    $region18: #{tpu_custom_call.1} parent=1 // pred_check
      _
    $region19: #{tpu_custom_call.1} parent=1 // pred_check_branch
      %501 = sbr.rel (0) target = $region21
    $region20: #{tpu_custom_call.1} parent=1 // pred_region
      %s503 = ssub.s32 32, 32
      %504 = vsyncadd [#allocation4], %s503
      %s506 = sshll.u32 [#allocation5], 4
      %s507 = int_to_ptr.vmem [resolvable:$true] %s506
      %509 = dma.vmem_to_hbm [thread:$0]  %s507, 32, %s3, [#allocation4]
    $region21: #{tpu_custom_call.1} parent=1 // pred_fallthru
      _
    // Predicated region
    $region22: #{tpu_custom_call.1} parent=1 // pred_check
      _
    $region23: #{tpu_custom_call.1} parent=1 // pred_check_branch
      %511 = sbr.rel (0) target = $region25
    $region24: #{tpu_custom_call.1} parent=1 // pred_region
      %512 = dma.done [#allocation4], 32
    $region25: #{tpu_custom_call.1} parent=1 // pred_fallthru
      _
    %513 = vsyncpa [#allocation3], 1
    %514 = vsyncpa [#allocation4], 1

</llo_original>
